<compile_context>
chip_gen: v7x
topology: tpu7x:2x2x1
jax: 0.10.0
libtpu: 0.0.40
codegen_flags: <defaults>
</compile_context>

<pallas_src>
import functools

import jax
import jax.numpy as jnp
from jax import lax
from jax.experimental import pallas as pl
from jax.experimental.pallas import tpu as pltpu

_VMEM_LIMIT = 48 * 1024 * 1024       # scoped-VMEM ceiling (safe on v5e/v6e/v7x)
_BLOCK_BUDGET = 24 * 1024 * 1024     # budget for the double-buffered batch blocks


def _pick_block_rows(n, bytes_per_row):
    """Batch-row block size from the VMEM budget, (8,128)-rule friendly."""
    nb = _BLOCK_BUDGET // max(int(bytes_per_row), 1)
    nb = int(max(8, min(nb, 512)))
    nb -= nb % 8
    if n >= 16:
        # v7x has 2 TensorCores: keep at least two grid steps on the parallel axis.
        nb = min(nb, max(8, 8 * ((n + 15) // 16)))
    if nb >= n:
        return int(n)
    return int(nb)


# ----------------------------------------------------------------------------- #
# Linear (final classifier): row-tiled, bf16 inputs / f32 accumulate
# ----------------------------------------------------------------------------- #
def linear_kernel(x_ref, w_ref, b_ref, o_ref):
    o_ref[...] = jnp.dot(x_ref[...], w_ref[...],
                         preferred_element_type=jnp.float32) + b_ref[...]


def linear(x, w, b):
    """x: (M, K), w: (K, N), b: (N,) -> (M, N) f32."""
    M, K = x.shape
    N = w.shape[1]
    TM = M if M <= 256 else 256
    grid = (pl.cdiv(M, TM),)
    return pl.pallas_call(
        linear_kernel,
        out_shape=jax.ShapeDtypeStruct((M, N), jnp.float32),
        grid=grid,
        in_specs=[pl.BlockSpec((TM, K), lambda i: (i, 0)),
                  pl.BlockSpec((K, N), lambda i: (0, 0)),
                  pl.BlockSpec((1, N), lambda i: (0, 0))],
        out_specs=pl.BlockSpec((TM, N), lambda i: (i, 0)),
        compiler_params=pltpu.CompilerParams(
            dimension_semantics=("parallel",),
            vmem_limit_bytes=_VMEM_LIMIT),
    )(x.astype(jnp.bfloat16), w.astype(jnp.bfloat16),
      b.reshape(1, N).astype(jnp.float32))


# ----------------------------------------------------------------------------- #
# Fused bidirectional GRU layer (time-major, fori_loop recurrence)
# ----------------------------------------------------------------------------- #
def bigru_kernel(ml_ref,                                   # SMEM (G,) block max length
                 x_ref, len_ref,                           # (T,NB,Din) bf16, (NB,1) i32
                 wif_ref, wib_ref,                         # (Din,3H) bf16
                 whf_ref, whb_ref,                         # (H,3H)   f32
                 bif_ref, bib_ref, bhf_ref, bhb_ref,       # (1,3H)   f32
                 out_ref):                                 # (T,NB,2H) bf16
    T, NB, Din = x_ref.shape
    H = whf_ref.shape[0]

    # Padded timesteps (t >= block max length) must read back as zeros downstream
    # (matches pad_packed_sequence); the loop below only writes t < tmax.
    out_ref[...] = jnp.zeros_like(out_ref)

    tmax = ml_ref[pl.program_id(0)]

    lens = len_ref[...]                                    # (NB, 1) int32
    wif = wif_ref[...]
    wib = wib_ref[...]
    whf = whf_ref[...]
    whb = whb_ref[...]
    bif = bif_ref[...]
    bib = bib_ref[...]
    bhf = bhf_ref[...]
    bhb = bhb_ref[...]

    def sigmoid_t(v):
        # single-EUP sigmoid: sigma(v) = 0.5 * (1 + tanh(v / 2))
        return 0.5 * (jnp.tanh(0.5 * v) + 1.0)

    def cell(h, xp, whh, bhh):
        # PyTorch GRU gate order r, z, n; recurrent matmul kept in f32 (tiny, and
        # avoids compounding bf16 rounding of h over T steps).
        g = jnp.dot(h, whh, preferred_element_type=jnp.float32) + bhh
        r = sigmoid_t(xp[:, :H] + g[:, :H])
        z = sigmoid_t(xp[:, H:2 * H] + g[:, H:2 * H])
        n = jnp.tanh(xp[:, 2 * H:] + r * g[:, 2 * H:])
        return n + z * (h - n)                             # == (1-z)*n + z*h

    def step(k, carry):
        hf, hb = carry
        t = k
        s = tmax - 1 - k
        # Leading-dim dynamic loads: no sublane relayout.
        xt = x_ref[t]                                      # (NB, Din) bf16
        xs = x_ref[s]
        # In-kernel fused input projection (never hits HBM).
        xpf = jnp.dot(xt, wif, preferred_element_type=jnp.float32) + bif
        xpb = jnp.dot(xs, wib, preferred_element_type=jnp.float32) + bib
        # Two independent recurrence chains interleaved in one iteration.
        hf_new = cell(hf, xpf, whf, bhf)
        hb_new = cell(hb, xpb, whb, bhb)
        vf = lens > t                                      # (NB, 1) bool
        vb = lens > s
        hf = jnp.where(vf, hf_new, hf)                     # packed-sequence semantics
        hb = jnp.where(vb, hb_new, hb)
        out_ref[t, :, 0:H] = jnp.where(vf, hf, 0.0).astype(out_ref.dtype)
        out_ref[s, :, H:2 * H] = jnp.where(vb, hb, 0.0).astype(out_ref.dtype)
        return hf, hb

    h0 = jnp.zeros((NB, H), jnp.float32)
    lax.fori_loop(0, tmax, step, (h0, h0))


def bi_gru_layer_tm(x_tm, lens, layer):
    """x_tm: (T, N, Din) bf16/f32, lens: (N,) int32 -> (T, N, 2H) bf16 (masked)."""
    T, N, Din = x_tm.shape
    H = layer["whh_f"].shape[1]
    H3 = 3 * H

    # Pre-cast / pre-transpose weights once on the host (not per grid step).
    wif = layer["wih_f"].T.astype(jnp.bfloat16)            # (Din, 3H)
    wib = layer["wih_b"].T.astype(jnp.bfloat16)
    whf = layer["whh_f"].T.astype(jnp.float32)             # (H, 3H)
    whb = layer["whh_b"].T.astype(jnp.float32)
    bif = layer["bih_f"].reshape(1, H3).astype(jnp.float32)
    bib = layer["bih_b"].reshape(1, H3).astype(jnp.float32)
    bhf = layer["bhh_f"].reshape(1, H3).astype(jnp.float32)
    bhb = layer["bhh_b"].reshape(1, H3).astype(jnp.float32)

    # bf16 x block + bf16 out block, both double-buffered.
    NB = _pick_block_rows(N, 4 * T * (Din + 2 * H) + 64)
    G = pl.cdiv(N, NB)

    lens = lens.astype(jnp.int32)
    lens2 = lens.reshape(N, 1)
    lens_pad = jnp.zeros((G * NB,), jnp.int32).at[:N].set(lens)
    blk_max = jnp.max(lens_pad.reshape(G, NB), axis=1).astype(jnp.int32)   # (G,)

    return pl.pallas_call(
        bigru_kernel,
        out_shape=jax.ShapeDtypeStruct((T, N, 2 * H), jnp.bfloat16),
        grid_spec=pltpu.PrefetchScalarGridSpec(
            num_scalar_prefetch=1,
            grid=(G,),
            in_specs=[
                pl.BlockSpec((T, NB, Din), lambda i, ml: (0, i, 0)),
                pl.BlockSpec((NB, 1), lambda i, ml: (i, 0)),
                pl.BlockSpec((Din, H3), lambda i, ml: (0, 0)),
                pl.BlockSpec((Din, H3), lambda i, ml: (0, 0)),
                pl.BlockSpec((H, H3), lambda i, ml: (0, 0)),
                pl.BlockSpec((H, H3), lambda i, ml: (0, 0)),
                pl.BlockSpec((1, H3), lambda i, ml: (0, 0)),
                pl.BlockSpec((1, H3), lambda i, ml: (0, 0)),
                pl.BlockSpec((1, H3), lambda i, ml: (0, 0)),
                pl.BlockSpec((1, H3), lambda i, ml: (0, 0)),
            ],
            out_specs=pl.BlockSpec((T, NB, 2 * H), lambda i, ml: (0, i, 0)),
        ),
        compiler_params=pltpu.CompilerParams(
            dimension_semantics=("parallel",),
            vmem_limit_bytes=_VMEM_LIMIT),
    )(blk_max, x_tm.astype(jnp.bfloat16), lens2,
      wif, wib, whf, whb, bif, bib, bhf, bhb)


# ----------------------------------------------------------------------------- #
# Attention pooling: a block of sequences per grid step, masked softmax over T
# ----------------------------------------------------------------------------- #
def attn_pool_kernel(h_ref, m_ref, w_ref, b_ref, u_ref, pooled_ref, alpha_ref, *, attn):
    h32 = h_ref[...].astype(jnp.float32)                    # (NB, T, D)
    m = m_ref[...]                                          # (NB, T) f32
    NB, T, D = h32.shape
    A = w_ref.shape[1]

    h2 = h32.reshape(NB * T, D).astype(jnp.bfloat16)
    att = jnp.tanh(jnp.dot(h2, w_ref[...],
                           preferred_element_type=jnp.float32) + b_ref[...])   # (NB*T, A)
    # Context-vector score as VPU multiply + lane reduction (no 1-lane MXU output).
    s = jnp.sum(att.reshape(NB, T, A) * u_ref[...].reshape(1, 1, A), axis=-1)  # (NB, T)

    s_m = jnp.where(m > 0.0, s, -1e30)
    smax = jnp.max(s_m, axis=-1, keepdims=True)
    e = jnp.exp(s_m - smax) * m
    denom = jnp.sum(e, axis=-1, keepdims=True)
    denom = jnp.where(denom > 0.0, denom, 1.0)
    alpha = e / denom                                       # (NB, T)
    alpha_ref[...] = alpha

    weight = alpha if attn else m
    pooled_ref[...] = jnp.sum(h32 * weight[:, :, None], axis=1)   # (NB, D)


def attn_pool(h, mask, w_att, b_att, u, attn):
    """h: (N, T, D) bf16, mask: (N, T) -> pooled (N, D) f32, alphas (N, T) f32."""
    N, T, D = h.shape
    A = w_att.shape[1]
    NB = _pick_block_rows(N, 4 * T * D + 16 * T + 8 * D + 64)
    grid = (pl.cdiv(N, NB),)
    kernel = functools.partial(attn_pool_kernel, attn=bool(attn))
    pooled, alpha = pl.pallas_call(
        kernel,
        out_shape=(jax.ShapeDtypeStruct((N, D), jnp.float32),
                   jax.ShapeDtypeStruct((N, T), jnp.float32)),
        grid=grid,
        in_specs=[pl.BlockSpec((NB, T, D), lambda i: (i, 0, 0)),
                  pl.BlockSpec((NB, T), lambda i: (i, 0)),
                  pl.BlockSpec((D, A), lambda i: (0, 0)),
                  pl.BlockSpec((1, A), lambda i: (0, 0)),
                  pl.BlockSpec((1, A), lambda i: (0, 0))],
        out_specs=(pl.BlockSpec((NB, D), lambda i: (i, 0)),
                   pl.BlockSpec((NB, T), lambda i: (i, 0))),
        compiler_params=pltpu.CompilerParams(
            dimension_semantics=("parallel",),
            vmem_limit_bytes=_VMEM_LIMIT),
    )(h.astype(jnp.bfloat16), mask.astype(jnp.float32),
      w_att.astype(jnp.bfloat16), b_att.reshape(1, A).astype(jnp.float32),
      u.reshape(1, A).astype(jnp.float32))
    return pooled, alpha


# ----------------------------------------------------------------------------- #
# Full HAN forward
# ----------------------------------------------------------------------------- #
def han_forward(params, documents, sentences_per_document, words_per_sentence,
                bert_features=None, attn=1):
    B, S, T = documents.shape
    emb_bf = params["emb"].astype(jnp.bfloat16)

    # ---- Word level ---------------------------------------------------------
    sent_tokens = documents.reshape(B * S, T)
    wps_flat = words_per_sentence.reshape(B * S).astype(jnp.int32)
    word_mask = (jnp.arange(T)[None, :] < wps_flat[:, None]).astype(jnp.float32)  # (B*S, T)

    # Embedding gather directly into time-major layout (XLA gather).
    x = emb_bf[sent_tokens.T]                               # (T, B*S, E) bf16
    # TODO(synk): dropout is identity (eval mode).

    for layer in params["word_gru"]:
        x = bi_gru_layer_tm(x, wps_flat, layer)             # (T, B*S, 2Hw) bf16, masked

    h_words = jnp.transpose(x, (1, 0, 2))                   # (B*S, T, 2Hw) for pooling
    sent_emb, word_alphas = attn_pool(h_words, word_mask,
                                      params["w_att_w"], params["b_att_w"],
                                      params["u_w"], attn)  # (B*S, 2Hw), (B*S, T)

    sent_mask = (jnp.arange(S)[None, :] <
                 sentences_per_document[:, None]).astype(jnp.float32)    # (B, S)
    Dw = sent_emb.shape[-1]
    sent_emb = sent_emb.reshape(B, S, Dw) * sent_mask[:, :, None]
    word_alphas = word_alphas.reshape(B, S, T) * sent_mask[:, :, None]

    # ---- Sentence level -----------------------------------------------------
    xs = jnp.transpose(sent_emb, (1, 0, 2))                 # (S, B, Dw), small
    if bert_features is not None:
        xs = jnp.concatenate(
            [xs, jnp.transpose(bert_features, (1, 0, 2)).astype(xs.dtype)], axis=-1)
    xs = xs.astype(jnp.bfloat16)
    spd = sentences_per_document.astype(jnp.int32)
    for layer in params["sent_gru"]:
        xs = bi_gru_layer_tm(xs, spd, layer)                # (S, B, 2Hs) bf16, masked

    h_sents = jnp.transpose(xs, (1, 0, 2))                  # (B, S, 2Hs)
    doc_emb, sent_alphas = attn_pool(h_sents, sent_mask,
                                     params["w_att_s"], params["b_att_s"],
                                     params["u_s"], attn)   # (B, 2Hs), (B, S)

    # ---- Classifier ---------------------------------------------------------
    scores = linear(doc_emb, params["w_fc"], params["b_fc"])
    return doc_emb, scores, word_alphas, sent_alphas


# ----------------------------------------------------------------------------- #
# Deterministic parameter initialization (matches nn.Module shapes, PyTorch layout)
# ----------------------------------------------------------------------------- #
def init_params(key, n_classes, vocab_size, emb_size, word_rnn_size, sentence_rnn_size,
                word_rnn_layers, sentence_rnn_layers, word_att_size, sentence_att_size,
                bert_feature_dim=0):
    keys = iter(jax.random.split(key, 128))

    def nrm(shape, scale=0.1):
        return scale * jax.random.normal(next(keys), shape, jnp.float32)

    def gru_layers(num_layers, in0, H):
        layers = []
        for l in range(num_layers):
            din = in0 if l == 0 else 2 * H
            layer = {}
            for d in ("f", "b"):
                layer["wih_" + d] = nrm((3 * H, din))
                layer["whh_" + d] = nrm((3 * H, H))
                layer["bih_" + d] = nrm((3 * H,))
                layer["bhh_" + d] = nrm((3 * H,))
            layers.append(layer)
        return layers

    params = {
        "emb": nrm((vocab_size, emb_size), 0.5),
        "word_gru": gru_layers(word_rnn_layers, emb_size, word_rnn_size),
        "sent_gru": gru_layers(sentence_rnn_layers,
                               2 * word_rnn_size + bert_feature_dim, sentence_rnn_size),
        # attention weights stored pre-transposed as (in, out) for x @ W convention
        "w_att_w": nrm((2 * word_rnn_size, word_att_size)),
        "b_att_w": nrm((word_att_size,)),
        "u_w": nrm((word_att_size, 1)),
        "w_att_s": nrm((2 * sentence_rnn_size, sentence_att_size)),
        "b_att_s": nrm((sentence_att_size,)),
        "u_s": nrm((sentence_att_size, 1)),
        "w_fc": nrm((2 * sentence_rnn_size, n_classes)),
        "b_fc": nrm((n_classes,)),
    }
    return params


# ----------------------------------------------------------------------------- #
if __name__ == "__main__":
    n_classes = 4
    vocab_size = 100
    emb_size = 32
    word_rnn_size = 16
    sentence_rnn_size = 16
    word_rnn_layers = 1
    sentence_rnn_layers = 1
    word_att_size = 32
    sentence_att_size = 32
    bert_feature_dim = 0

    key = jax.random.PRNGKey(0)
    kp, kd = jax.random.split(key)
    params = init_params(kp, n_classes, vocab_size, emb_size, word_rnn_size,
                         sentence_rnn_size, word_rnn_layers, sentence_rnn_layers,
                         word_att_size, sentence_att_size, bert_feature_dim)

    batch, max_sents, max_words = 2, 4, 8
    documents = jax.random.randint(kd, (batch, max_sents, max_words), 0, vocab_size,
                                   dtype=jnp.int32)
    sentences_per_document = jnp.array([3, 2], dtype=jnp.int32)
    words_per_sentence = jnp.array([[5, 8, 3, 0],
                                    [7, 4, 0, 0]], dtype=jnp.int32)

    doc_emb, scores, word_alphas, sent_alphas = han_forward(
        params, documents, sentences_per_document, words_per_sentence,
        bert_features=None, attn=1)

    jax.block_until_ready((doc_emb, scores, word_alphas, sent_alphas))

    assert doc_emb.shape == (batch, 2 * sentence_rnn_size)
    assert scores.shape == (batch, n_classes)
    assert word_alphas.shape == (batch, max_sents, max_words)
    assert sent_alphas.shape == (batch, max_sents)
    assert bool(jnp.all(jnp.isfinite(scores)))
    assert bool(jnp.all(jnp.isfinite(word_alphas)))
    assert bool(jnp.all(jnp.isfinite(sent_alphas)))
    print("KERNEL_OK")
</pallas_src>

<mosaic_0001>
module attributes {stable_mosaic.version = 11 : i64} {
  func.func @bigru_kernel(%arg0: i32, %arg1: memref<1xi32, #tpu.memory_space<smem>>, %arg2: memref<8x8x32xbf16, #tpu.memory_space<vmem>>, %arg3: memref<8x1xi32, #tpu.memory_space<vmem>>, %arg4: memref<32x48xbf16, #tpu.memory_space<vmem>>, %arg5: memref<32x48xbf16, #tpu.memory_space<vmem>>, %arg6: memref<16x48xf32, #tpu.memory_space<vmem>>, %arg7: memref<16x48xf32, #tpu.memory_space<vmem>>, %arg8: memref<1x48xf32, #tpu.memory_space<vmem>>, %arg9: memref<1x48xf32, #tpu.memory_space<vmem>>, %arg10: memref<1x48xf32, #tpu.memory_space<vmem>>, %arg11: memref<1x48xf32, #tpu.memory_space<vmem>>, %arg12: memref<8x8x32xbf16, #tpu.memory_space<vmem>>) attributes {dimension_semantics = [#tpu.dimension_semantics<parallel>], iteration_bounds = array<i64: 1>, scalar_prefetch = 1 : i64, scratch_operands = 0 : i64, tpu.core_type = #tpu.core_type<tc>, window_params = [{transform_indices = @transform_0, window_bounds = array<i64: 8, 8, 32>}, {transform_indices = @transform_1, window_bounds = array<i64: 8, 1>}, {pipeline_mode = #tpu.pipeline_mode<synchronous>, transform_indices = @transform_2, window_bounds = array<i64: 32, 48>}, {pipeline_mode = #tpu.pipeline_mode<synchronous>, transform_indices = @transform_3, window_bounds = array<i64: 32, 48>}, {pipeline_mode = #tpu.pipeline_mode<synchronous>, transform_indices = @transform_4, window_bounds = array<i64: 16, 48>}, {pipeline_mode = #tpu.pipeline_mode<synchronous>, transform_indices = @transform_5, window_bounds = array<i64: 16, 48>}, {pipeline_mode = #tpu.pipeline_mode<synchronous>, transform_indices = @transform_6, window_bounds = array<i64: 1, 48>}, {pipeline_mode = #tpu.pipeline_mode<synchronous>, transform_indices = @transform_7, window_bounds = array<i64: 1, 48>}, {pipeline_mode = #tpu.pipeline_mode<synchronous>, transform_indices = @transform_8, window_bounds = array<i64: 1, 48>}, {pipeline_mode = #tpu.pipeline_mode<synchronous>, transform_indices = @transform_9, window_bounds = array<i64: 1, 48>}, {transform_indices = @transform_10, window_bounds = array<i64: 8, 8, 32>}]} {
    %cst = arith.constant 0.000000e+00 : bf16
    %0 = vector.broadcast %cst : bf16 to vector<8x8x32xbf16>
    %c0 = arith.constant 0 : index
    %c0_0 = arith.constant 0 : index
    %c0_1 = arith.constant 0 : index
    %1 = vector.load %arg12[%c0, %c0_0, %c0_1] : memref<8x8x32xbf16, #tpu.memory_space<vmem>>, vector<8x8x32xbf16>
    tpu.vector_store %arg12[%c0, %c0_0, %c0_1], %0 {strides = array<i32>} : memref<8x8x32xbf16, #tpu.memory_space<vmem>>, vector<8x8x32xbf16>,
    %2 = arith.index_cast %arg0 : i32 to index
    %3 = memref.load %arg1[%2] : memref<1xi32, #tpu.memory_space<smem>>
    %c0_2 = arith.constant 0 : index
    %c0_3 = arith.constant 0 : index
    %4 = vector.load %arg3[%c0_2, %c0_3] : memref<8x1xi32, #tpu.memory_space<vmem>>, vector<8x1xi32>
    %c0_4 = arith.constant 0 : index
    %c0_5 = arith.constant 0 : index
    %5 = vector.load %arg4[%c0_4, %c0_5] : memref<32x48xbf16, #tpu.memory_space<vmem>>, vector<32x48xbf16>
    %c0_6 = arith.constant 0 : index
    %c0_7 = arith.constant 0 : index
    %6 = vector.load %arg5[%c0_6, %c0_7] : memref<32x48xbf16, #tpu.memory_space<vmem>>, vector<32x48xbf16>
    %c0_8 = arith.constant 0 : index
    %c0_9 = arith.constant 0 : index
    %7 = vector.load %arg6[%c0_8, %c0_9] : memref<16x48xf32, #tpu.memory_space<vmem>>, vector<16x48xf32>
    %c0_10 = arith.constant 0 : index
    %c0_11 = arith.constant 0 : index
    %8 = vector.load %arg7[%c0_10, %c0_11] : memref<16x48xf32, #tpu.memory_space<vmem>>, vector<16x48xf32>
    %c0_12 = arith.constant 0 : index
    %c0_13 = arith.constant 0 : index
    %9 = vector.load %arg8[%c0_12, %c0_13] : memref<1x48xf32, #tpu.memory_space<vmem>>, vector<1x48xf32>
    %c0_14 = arith.constant 0 : index
    %c0_15 = arith.constant 0 : index
    %10 = vector.load %arg9[%c0_14, %c0_15] : memref<1x48xf32, #tpu.memory_space<vmem>>, vector<1x48xf32>
    %c0_16 = arith.constant 0 : index
    %c0_17 = arith.constant 0 : index
    %11 = vector.load %arg10[%c0_16, %c0_17] : memref<1x48xf32, #tpu.memory_space<vmem>>, vector<1x48xf32>
    %c0_18 = arith.constant 0 : index
    %c0_19 = arith.constant 0 : index
    %12 = vector.load %arg11[%c0_18, %c0_19] : memref<1x48xf32, #tpu.memory_space<vmem>>, vector<1x48xf32>
    %cst_20 = arith.constant 0.000000e+00 : f32
    %13 = vector.broadcast %cst_20 : f32 to vector<8x16xf32>
    %c0_i32 = arith.constant 0 : i32
    %14 = arith.subi %3, %c0_i32 : i32
    %15 = arith.addi %c0_i32, %14 : i32
    %c1_i32 = arith.constant 1 : i32
    %16:2 = scf.for %arg13 = %c0_i32 to %15 step %c1_i32 iter_args(%arg14 = %13, %arg15 = %13) -> (vector<8x16xf32>, vector<8x16xf32>)  : i32 {
      %c1_i32_21 = arith.constant 1 : i32
      %17 = arith.subi %3, %c1_i32_21 : i32
      %18 = arith.subi %17, %arg13 : i32
      %19 = arith.index_cast %arg13 : i32 to index
      %c0_22 = arith.constant 0 : index
      %c0_23 = arith.constant 0 : index
      %20 = vector.load %arg2[%19, %c0_22, %c0_23] : memref<8x8x32xbf16, #tpu.memory_space<vmem>>, vector<1x8x32xbf16>
      %21 = vector.shape_cast %20 : vector<1x8x32xbf16> to vector<8x32xbf16>
      %22 = arith.index_cast %18 : i32 to index
      %c0_24 = arith.constant 0 : index
      %c0_25 = arith.constant 0 : index
      %23 = vector.load %arg2[%22, %c0_24, %c0_25] : memref<8x8x32xbf16, #tpu.memory_space<vmem>>, vector<1x8x32xbf16>
      %24 = vector.shape_cast %23 : vector<1x8x32xbf16> to vector<8x32xbf16>
      %cst_26 = arith.constant dense<0.000000e+00> : vector<8x48xf32>
      %25 = tpu.matmul %21, %5, %cst_26 {dimension_numbers = #tpu.dot_dimension_numbers<[1], [0], [0], [1], [0, 0, 1, 1], [], []>} : vector<8x32xbf16>, vector<32x48xbf16>, vector<8x48xf32> -> vector<8x48xf32>
      %26 = vector.broadcast %9 : vector<1x48xf32> to vector<8x48xf32>
      %27 = arith.addf %25, %26 : vector<8x48xf32>
      %cst_27 = arith.constant dense<0.000000e+00> : vector<8x48xf32>
      %28 = tpu.matmul %24, %6, %cst_27 {dimension_numbers = #tpu.dot_dimension_numbers<[1], [0], [0], [1], [0, 0, 1, 1], [], []>} : vector<8x32xbf16>, vector<32x48xbf16>, vector<8x48xf32> -> vector<8x48xf32>
      %29 = vector.broadcast %10 : vector<1x48xf32> to vector<8x48xf32>
      %30 = arith.addf %28, %29 : vector<8x48xf32>
      %cst_28 = arith.constant dense<0.000000e+00> : vector<8x48xf32>
      %31 = tpu.matmul %arg14, %7, %cst_28 {dimension_numbers = #tpu.dot_dimension_numbers<[1], [0], [0], [1], [0, 0, 1, 1], [], []>} : vector<8x16xf32>, vector<16x48xf32>, vector<8x48xf32> -> vector<8x48xf32>
      %32 = vector.broadcast %11 : vector<1x48xf32> to vector<8x48xf32>
      %33 = arith.addf %31, %32 : vector<8x48xf32>
      %34 = vector.extract_strided_slice %27 {offsets = [0, 0], sizes = [8, 16], strides = [1, 1]} : vector<8x48xf32> to vector<8x16xf32>
      %35 = vector.extract_strided_slice %33 {offsets = [0, 0], sizes = [8, 16], strides = [1, 1]} : vector<8x48xf32> to vector<8x16xf32>
      %36 = arith.addf %34, %35 : vector<8x16xf32>
      %cst_29 = arith.constant 5.000000e-01 : f32
      %37 = vector.broadcast %cst_29 : f32 to vector<8x16xf32>
      %38 = arith.mulf %37, %36 : vector<8x16xf32>
      %39 = math.tanh %38 : vector<8x16xf32>
      %cst_30 = arith.constant 1.000000e+00 : f32
      %40 = vector.broadcast %cst_30 : f32 to vector<8x16xf32>
      %41 = arith.addf %39, %40 : vector<8x16xf32>
      %cst_31 = arith.constant 5.000000e-01 : f32
      %42 = vector.broadcast %cst_31 : f32 to vector<8x16xf32>
      %43 = arith.mulf %42, %41 : vector<8x16xf32>
      %44 = vector.extract_strided_slice %27 {offsets = [0, 16], sizes = [8, 16], strides = [1, 1]} : vector<8x48xf32> to vector<8x16xf32>
      %45 = vector.extract_strided_slice %33 {offsets = [0, 16], sizes = [8, 16], strides = [1, 1]} : vector<8x48xf32> to vector<8x16xf32>
      %46 = arith.addf %44, %45 : vector<8x16xf32>
      %cst_32 = arith.constant 5.000000e-01 : f32
      %47 = vector.broadcast %cst_32 : f32 to vector<8x16xf32>
      %48 = arith.mulf %47, %46 : vector<8x16xf32>
      %49 = math.tanh %48 : vector<8x16xf32>
      %cst_33 = arith.constant 1.000000e+00 : f32
      %50 = vector.broadcast %cst_33 : f32 to vector<8x16xf32>
      %51 = arith.addf %49, %50 : vector<8x16xf32>
      %cst_34 = arith.constant 5.000000e-01 : f32
      %52 = vector.broadcast %cst_34 : f32 to vector<8x16xf32>
      %53 = arith.mulf %52, %51 : vector<8x16xf32>
      %54 = vector.extract_strided_slice %27 {offsets = [0, 32], sizes = [8, 16], strides = [1, 1]} : vector<8x48xf32> to vector<8x16xf32>
      %55 = vector.extract_strided_slice %33 {offsets = [0, 32], sizes = [8, 16], strides = [1, 1]} : vector<8x48xf32> to vector<8x16xf32>
      %56 = arith.mulf %43, %55 : vector<8x16xf32>
      %57 = arith.addf %54, %56 : vector<8x16xf32>
      %58 = math.tanh %57 : vector<8x16xf32>
      %59 = arith.subf %arg14, %58 : vector<8x16xf32>
      %60 = arith.mulf %53, %59 : vector<8x16xf32>
      %61 = arith.addf %58, %60 : vector<8x16xf32>
      %cst_35 = arith.constant dense<0.000000e+00> : vector<8x48xf32>
      %62 = tpu.matmul %arg15, %8, %cst_35 {dimension_numbers = #tpu.dot_dimension_numbers<[1], [0], [0], [1], [0, 0, 1, 1], [], []>} : vector<8x16xf32>, vector<16x48xf32>, vector<8x48xf32> -> vector<8x48xf32>
      %63 = vector.broadcast %12 : vector<1x48xf32> to vector<8x48xf32>
      %64 = arith.addf %62, %63 : vector<8x48xf32>
      %65 = vector.extract_strided_slice %30 {offsets = [0, 0], sizes = [8, 16], strides = [1, 1]} : vector<8x48xf32> to vector<8x16xf32>
      %66 = vector.extract_strided_slice %64 {offsets = [0, 0], sizes = [8, 16], strides = [1, 1]} : vector<8x48xf32> to vector<8x16xf32>
      %67 = arith.addf %65, %66 : vector<8x16xf32>
      %cst_36 = arith.constant 5.000000e-01 : f32
      %68 = vector.broadcast %cst_36 : f32 to vector<8x16xf32>
      %69 = arith.mulf %68, %67 : vector<8x16xf32>
      %70 = math.tanh %69 : vector<8x16xf32>
      %cst_37 = arith.constant 1.000000e+00 : f32
      %71 = vector.broadcast %cst_37 : f32 to vector<8x16xf32>
      %72 = arith.addf %70, %71 : vector<8x16xf32>
      %cst_38 = arith.constant 5.000000e-01 : f32
      %73 = vector.broadcast %cst_38 : f32 to vector<8x16xf32>
      %74 = arith.mulf %73, %72 : vector<8x16xf32>
      %75 = vector.extract_strided_slice %30 {offsets = [0, 16], sizes = [8, 16], strides = [1, 1]} : vector<8x48xf32> to vector<8x16xf32>
      %76 = vector.extract_strided_slice %64 {offsets = [0, 16], sizes = [8, 16], strides = [1, 1]} : vector<8x48xf32> to vector<8x16xf32>
      %77 = arith.addf %75, %76 : vector<8x16xf32>
      %cst_39 = arith.constant 5.000000e-01 : f32
      %78 = vector.broadcast %cst_39 : f32 to vector<8x16xf32>
      %79 = arith.mulf %78, %77 : vector<8x16xf32>
      %80 = math.tanh %79 : vector<8x16xf32>
      %cst_40 = arith.constant 1.000000e+00 : f32
      %81 = vector.broadcast %cst_40 : f32 to vector<8x16xf32>
      %82 = arith.addf %80, %81 : vector<8x16xf32>
      %cst_41 = arith.constant 5.000000e-01 : f32
      %83 = vector.broadcast %cst_41 : f32 to vector<8x16xf32>
      %84 = arith.mulf %83, %82 : vector<8x16xf32>
      %85 = vector.extract_strided_slice %30 {offsets = [0, 32], sizes = [8, 16], strides = [1, 1]} : vector<8x48xf32> to vector<8x16xf32>
      %86 = vector.extract_strided_slice %64 {offsets = [0, 32], sizes = [8, 16], strides = [1, 1]} : vector<8x48xf32> to vector<8x16xf32>
      %87 = arith.mulf %74, %86 : vector<8x16xf32>
      %88 = arith.addf %85, %87 : vector<8x16xf32>
      %89 = math.tanh %88 : vector<8x16xf32>
      %90 = arith.subf %arg15, %89 : vector<8x16xf32>
      %91 = arith.mulf %84, %90 : vector<8x16xf32>
      %92 = arith.addf %89, %91 : vector<8x16xf32>
      %93 = vector.broadcast %arg13 : i32 to vector<8x1xi32>
      %94 = arith.cmpi sgt, %4, %93 : vector<8x1xi32>
      %95 = vector.broadcast %18 : i32 to vector<8x1xi32>
      %96 = arith.cmpi sgt, %4, %95 : vector<8x1xi32>
      %97 = vector.shape_cast %94 : vector<8x1xi1> to vector<8x1xi1>
      %98 = vector.broadcast %97 : vector<8x1xi1> to vector<8x16xi1>
      %99 = arith.select %98, %61, %arg14 : vector<8x16xi1>, vector<8x16xf32>
      %100 = vector.shape_cast %96 : vector<8x1xi1> to vector<8x1xi1>
      %101 = vector.broadcast %100 : vector<8x1xi1> to vector<8x16xi1>
      %102 = arith.select %101, %92, %arg15 : vector<8x16xi1>, vector<8x16xf32>
      %cst_42 = arith.constant 0.000000e+00 : f32
      %103 = vector.shape_cast %94 : vector<8x1xi1> to vector<8x1xi1>
      %104 = vector.broadcast %103 : vector<8x1xi1> to vector<8x16xi1>
      %105 = vector.broadcast %cst_42 : f32 to vector<8x16xf32>
      %106 = arith.select %104, %99, %105 : vector<8x16xi1>, vector<8x16xf32>
      %107 = arith.truncf %106 : vector<8x16xf32> to vector<8x16xbf16>
      %108 = arith.index_cast %arg13 : i32 to index
      %c0_43 = arith.constant 0 : index
      %c0_44 = arith.constant 0 : index
      %109 = vector.load %arg12[%108, %c0_43, %c0_44] : memref<8x8x32xbf16, #tpu.memory_space<vmem>>, vector<1x8x16xbf16>
      %110 = vector.shape_cast %109 : vector<1x8x16xbf16> to vector<8x16xbf16>
      %111 = vector.shape_cast %107 : vector<8x16xbf16> to vector<1x8x16xbf16>
      tpu.vector_store %arg12[%108, %c0_43, %c0_44], %111 {strides = array<i32>} : memref<8x8x32xbf16, #tpu.memory_space<vmem>>, vector<1x8x16xbf16>,
      %cst_45 = arith.constant 0.000000e+00 : f32
      %112 = vector.shape_cast %96 : vector<8x1xi1> to vector<8x1xi1>
      %113 = vector.broadcast %112 : vector<8x1xi1> to vector<8x16xi1>
      %114 = vector.broadcast %cst_45 : f32 to vector<8x16xf32>
      %115 = arith.select %113, %102, %114 : vector<8x16xi1>, vector<8x16xf32>
      %116 = arith.truncf %115 : vector<8x16xf32> to vector<8x16xbf16>
      %117 = arith.index_cast %18 : i32 to index
      %c0_46 = arith.constant 0 : index
      %c16 = arith.constant 16 : index
      %118 = vector.load %arg12[%117, %c0_46, %c16] : memref<8x8x32xbf16, #tpu.memory_space<vmem>>, vector<1x8x16xbf16>
      %119 = vector.shape_cast %118 : vector<1x8x16xbf16> to vector<8x16xbf16>
      %120 = vector.shape_cast %116 : vector<8x16xbf16> to vector<1x8x16xbf16>
      tpu.vector_store %arg12[%117, %c0_46, %c16], %120 {strides = array<i32>} : memref<8x8x32xbf16, #tpu.memory_space<vmem>>, vector<1x8x16xbf16>,
      scf.yield %99, %102 : vector<8x16xf32>, vector<8x16xf32>
    }
    return
  }
  func.func @transform_0(%arg0: i32, %arg1: memref<1xi32, #tpu.memory_space<smem>>) -> (i32, i32, i32) {
    %c0_i32 = arith.constant 0 : i32
    %c0_i32_0 = arith.constant 0 : i32
    %c0_i32_1 = arith.constant 0 : i32
    return %c0_i32, %arg0, %c0_i32_0 : i32, i32, i32
  }
  func.func @transform_1(%arg0: i32, %arg1: memref<1xi32, #tpu.memory_space<smem>>) -> (i32, i32) {
    %c0_i32 = arith.constant 0 : i32
    %c0_i32_0 = arith.constant 0 : i32
    return %arg0, %c0_i32 : i32, i32
  }
  func.func @transform_2(%arg0: i32, %arg1: memref<1xi32, #tpu.memory_space<smem>>) -> (i32, i32) {
    %c0_i32 = arith.constant 0 : i32
    %c0_i32_0 = arith.constant 0 : i32
    %c0_i32_1 = arith.constant 0 : i32
    return %c0_i32, %c0_i32_0 : i32, i32
  }
  func.func @transform_3(%arg0: i32, %arg1: memref<1xi32, #tpu.memory_space<smem>>) -> (i32, i32) {
    %c0_i32 = arith.constant 0 : i32
    %c0_i32_0 = arith.constant 0 : i32
    %c0_i32_1 = arith.constant 0 : i32
    return %c0_i32, %c0_i32_0 : i32, i32
  }
  func.func @transform_4(%arg0: i32, %arg1: memref<1xi32, #tpu.memory_space<smem>>) -> (i32, i32) {
    %c0_i32 = arith.constant 0 : i32
    %c0_i32_0 = arith.constant 0 : i32
    %c0_i32_1 = arith.constant 0 : i32
    return %c0_i32, %c0_i32_0 : i32, i32
  }
  func.func @transform_5(%arg0: i32, %arg1: memref<1xi32, #tpu.memory_space<smem>>) -> (i32, i32) {
    %c0_i32 = arith.constant 0 : i32
    %c0_i32_0 = arith.constant 0 : i32
    %c0_i32_1 = arith.constant 0 : i32
    return %c0_i32, %c0_i32_0 : i32, i32
  }
  func.func @transform_6(%arg0: i32, %arg1: memref<1xi32, #tpu.memory_space<smem>>) -> (i32, i32) {
    %c0_i32 = arith.constant 0 : i32
    %c0_i32_0 = arith.constant 0 : i32
    %c0_i32_1 = arith.constant 0 : i32
    return %c0_i32, %c0_i32_0 : i32, i32
  }
  func.func @transform_7(%arg0: i32, %arg1: memref<1xi32, #tpu.memory_space<smem>>) -> (i32, i32) {
    %c0_i32 = arith.constant 0 : i32
    %c0_i32_0 = arith.constant 0 : i32
    %c0_i32_1 = arith.constant 0 : i32
    return %c0_i32, %c0_i32_0 : i32, i32
  }
  func.func @transform_8(%arg0: i32, %arg1: memref<1xi32, #tpu.memory_space<smem>>) -> (i32, i32) {
    %c0_i32 = arith.constant 0 : i32
    %c0_i32_0 = arith.constant 0 : i32
    %c0_i32_1 = arith.constant 0 : i32
    return %c0_i32, %c0_i32_0 : i32, i32
  }
  func.func @transform_9(%arg0: i32, %arg1: memref<1xi32, #tpu.memory_space<smem>>) -> (i32, i32) {
    %c0_i32 = arith.constant 0 : i32
    %c0_i32_0 = arith.constant 0 : i32
    %c0_i32_1 = arith.constant 0 : i32
    return %c0_i32, %c0_i32_0 : i32, i32
  }
  func.func @transform_10(%arg0: i32, %arg1: memref<1xi32, #tpu.memory_space<smem>>) -> (i32, i32, i32) {
    %c0_i32 = arith.constant 0 : i32
    %c0_i32_0 = arith.constant 0 : i32
    %c0_i32_1 = arith.constant 0 : i32
    return %c0_i32, %arg0, %c0_i32_0 : i32, i32, i32
  }
}

</mosaic_0001>

<llo_original>
// kernel: tpu_custom_call.1
$region0: #{tpu_custom_call.1}
  #allocation0 [shape = 'u32[]', space=smem, size = 0x4, offset = 0x4, fixed_abs, tag = 'smem constant byte address 0x4 - core index']
  #allocation1 [shape = 'u32[144,128]{1,0:T(1,128)}', space=vmem, size = 0x12000, scoped, tag = 'internal scratch']
  #allocation2 [shape = 's32[1]{0}', space=sflag, size = 0x4, scoped, tag = 'scoped memory for tpu_custom_call.1']
  #allocation3 [shape = 's32[1]{0:T(128)S(6)}', space=smem, size = 0x200, scoped, tag = 'prefetched SMEM operand 0']
  %s0 = inlined_call_operand.<no memory space> [shape: s32[1], index: 0, kind: input, shape index: {}]
  %s1 = inlined_call_operand.hbm [shape: bf16[8,8,32], index: 1, kind: input, shape index: {}]
  %s2 = inlined_call_operand.vmem [shape: s32[8,1], index: 2, kind: input, shape index: {}]
  %s3 = inlined_call_operand.vmem [shape: bf16[32,48], index: 3, kind: input, shape index: {}]
  %s4 = inlined_call_operand.hbm [shape: bf16[32,48], index: 4, kind: input, shape index: {}]
  %s5 = inlined_call_operand.hbm [shape: f32[16,48], index: 5, kind: input, shape index: {}]
  %s6 = inlined_call_operand.hbm [shape: f32[16,48], index: 6, kind: input, shape index: {}]
  %s7 = inlined_call_operand.vmem [shape: f32[1,48], index: 7, kind: input, shape index: {}]
  %s8 = inlined_call_operand.vmem [shape: f32[1,48], index: 8, kind: input, shape index: {}]
  %s9 = inlined_call_operand.vmem [shape: f32[1,48], index: 9, kind: input, shape index: {}]
  %s10 = inlined_call_operand.vmem [shape: f32[1,48], index: 10, kind: input, shape index: {}]
  %s11 = inlined_call_operand.hbm [shape: bf16[8,8,32], index: 11, kind: output, shape index: {}]
  %s12 = sld [smem:[#allocation0]]
  $region73: #{tpu_custom_call.1} parent=0
    _
  %s14 = ssub.s32 1, %s12
  %s15 = scalar_select 0, %s14, %s12
  %16 = sst [smem:[#allocation3]] %s0
  $region1: #{tpu_custom_call.1} parent=0
    #allocation4 [shape = 'u8[16384]{0}', space=vmem, size = 0x4000, scoped, tag = 'input window, operand 1, single buffered']
    #allocation5 [shape = 's32[1]{0}', space=sflag, size = 0x4, scoped, tag = 'scoped memory for tpu_custom_call.1']
    #allocation6 [shape = 's32[1]{0}', space=sflag, size = 0x4, scoped, tag = 'scoped memory for tpu_custom_call.1']
    #allocation7 [shape = 'u8[8192]{0}', space=vmem, size = 0x2000, scoped, tag = 'input window, operand 4, single buffered']
    #allocation8 [shape = 's32[1]{0}', space=sflag, size = 0x4, scoped, tag = 'scoped memory for tpu_custom_call.1']
    #allocation9 [shape = 'u8[8192]{0}', space=vmem, size = 0x2000, scoped, tag = 'input window, operand 5, single buffered']
    #allocation10 [shape = 'u8[8192]{0}', space=vmem, size = 0x2000, scoped, tag = 'input window, operand 6, single buffered']
    #allocation11 [shape = 's32[1]{0}', space=sflag, size = 0x4, scoped, tag = 'scoped memory for tpu_custom_call.1']
    #allocation12 [shape = 'u8[16384]{0}', space=vmem, size = 0x4000, scoped, tag = 'output window, operand 0, single buffered']
    %17 = vsyncpa [#allocation5], 0
    %18 = vsyncpa [#allocation8], 0
    %19 = vsyncpa [#allocation11], 0
    %20 = vsyncpa [#allocation6], 0
    // Predicated region
    $region2: #{tpu_custom_call.1} parent=1 // pred_check
      _
    $region3: #{tpu_custom_call.1} parent=1 // pred_check_branch
      %22 = sbr.rel (0) target = $region5
    $region4: #{tpu_custom_call.1} parent=1 // pred_region
      %s24 = ssub.s32 512, 512
      %25 = vsyncadd [#allocation5], %s24
      %s26 = sshll.u32 [#allocation4], 4
      %s27 = int_to_ptr.vmem [resolvable:$true] %s26
      %32 = dma.hbm_to_vmem [thread:$0]  %s1, 512, %s27, [#allocation5], 64, 64, 4
    $region5: #{tpu_custom_call.1} parent=1 // pred_fallthru
      _
    // Predicated region
    $region6: #{tpu_custom_call.1} parent=1 // pred_check
      _
    $region7: #{tpu_custom_call.1} parent=1 // pred_check_branch
      %34 = sbr.rel (0) target = $region9
    $region8: #{tpu_custom_call.1} parent=1 // pred_region
      _
    $region9: #{tpu_custom_call.1} parent=1 // pred_fallthru
      _
    // Predicated region
    $region10: #{tpu_custom_call.1} parent=1 // pred_check
      _
    $region11: #{tpu_custom_call.1} parent=1 // pred_check_branch
      %36 = sbr.rel (0) target = $region13
    $region12: #{tpu_custom_call.1} parent=1 // pred_region
      _
    $region13: #{tpu_custom_call.1} parent=1 // pred_fallthru
      _
    // Predicated region
    $region14: #{tpu_custom_call.1} parent=1 // pred_check
      _
    $region15: #{tpu_custom_call.1} parent=1 // pred_check_branch
      %38 = sbr.rel (0) target = $region17
    $region16: #{tpu_custom_call.1} parent=1 // pred_region
      %s40 = ssub.s32 256, 256
      %41 = vsyncadd [#allocation8], %s40
      %s42 = sshll.u32 [#allocation7], 4
      %s43 = int_to_ptr.vmem [resolvable:$true] %s42
      %48 = dma.hbm_to_vmem [thread:$0]  %s4, 256, %s43, [#allocation8], 64, 64, 4
    $region17: #{tpu_custom_call.1} parent=1 // pred_fallthru
      _
    // Predicated region
    $region18: #{tpu_custom_call.1} parent=1 // pred_check
      _
    $region19: #{tpu_custom_call.1} parent=1 // pred_check_branch
      %50 = sbr.rel (0) target = $region21
    $region20: #{tpu_custom_call.1} parent=1 // pred_region
      %s52 = ssub.s32 256, 256
      %53 = vsyncadd [#allocation8], %s52
      %s54 = sshll.u32 [#allocation9], 4
      %s55 = int_to_ptr.vmem [resolvable:$true] %s54
      %60 = dma.hbm_to_vmem [thread:$0]  %s5, 256, %s55, [#allocation8], 128, 128, 8
    $region21: #{tpu_custom_call.1} parent=1 // pred_fallthru
      _
    // Predicated region
    $region22: #{tpu_custom_call.1} parent=1 // pred_check
      _
    $region23: #{tpu_custom_call.1} parent=1 // pred_check_branch
      %62 = sbr.rel (0) target = $region25
    $region24: #{tpu_custom_call.1} parent=1 // pred_region
      %s64 = ssub.s32 256, 256
      %65 = vsyncadd [#allocation11], %s64
      %s66 = sshll.u32 [#allocation10], 4
      %s67 = int_to_ptr.vmem [resolvable:$true] %s66
      %72 = dma.hbm_to_vmem [thread:$0]  %s6, 256, %s67, [#allocation11], 128, 128, 8
    $region25: #{tpu_custom_call.1} parent=1 // pred_fallthru
      _
    // Predicated region
    $region26: #{tpu_custom_call.1} parent=1 // pred_check
      _
    $region27: #{tpu_custom_call.1} parent=1 // pred_check_branch
      %74 = sbr.rel (0) target = $region29
    $region28: #{tpu_custom_call.1} parent=1 // pred_region
      _
    $region29: #{tpu_custom_call.1} parent=1 // pred_fallthru
      _
    // Predicated region
    $region30: #{tpu_custom_call.1} parent=1 // pred_check
      _
    $region31: #{tpu_custom_call.1} parent=1 // pred_check_branch
      %76 = sbr.rel (0) target = $region33
    $region32: #{tpu_custom_call.1} parent=1 // pred_region
      _
    $region33: #{tpu_custom_call.1} parent=1 // pred_fallthru
      _
    // Predicated region
    $region34: #{tpu_custom_call.1} parent=1 // pred_check
      _
    $region35: #{tpu_custom_call.1} parent=1 // pred_check_branch
      %78 = sbr.rel (0) target = $region37
    $region36: #{tpu_custom_call.1} parent=1 // pred_region
      _
    $region37: #{tpu_custom_call.1} parent=1 // pred_fallthru
      _
    // Predicated region
    $region38: #{tpu_custom_call.1} parent=1 // pred_check
      _
    $region39: #{tpu_custom_call.1} parent=1 // pred_check_branch
      %80 = sbr.rel (0) target = $region41
    $region40: #{tpu_custom_call.1} parent=1 // pred_region
      _
    $region41: #{tpu_custom_call.1} parent=1 // pred_fallthru
      _
    // Predicated region
    $region42: #{tpu_custom_call.1} parent=1 // pred_check
      _
    $region43: #{tpu_custom_call.1} parent=1 // pred_check_branch
      %82 = sbr.rel (0) target = $region45
    $region44: #{tpu_custom_call.1} parent=1 // pred_region
      %83 = dma.done [#allocation5], 512
    $region45: #{tpu_custom_call.1} parent=1 // pred_fallthru
      _
    // Predicated region
    $region46: #{tpu_custom_call.1} parent=1 // pred_check
      _
    $region47: #{tpu_custom_call.1} parent=1 // pred_check_branch
      %85 = sbr.rel (0) target = $region49
    $region48: #{tpu_custom_call.1} parent=1 // pred_region
      %86 = dma.done [#allocation8], 256
    $region49: #{tpu_custom_call.1} parent=1 // pred_fallthru
      _
    // Predicated region
    $region50: #{tpu_custom_call.1} parent=1 // pred_check
      _
    $region51: #{tpu_custom_call.1} parent=1 // pred_check_branch
      %88 = sbr.rel (0) target = $region53
    $region52: #{tpu_custom_call.1} parent=1 // pred_region
      %89 = dma.done [#allocation8], 256
    $region53: #{tpu_custom_call.1} parent=1 // pred_fallthru
      _
    // Predicated region
    $region54: #{tpu_custom_call.1} parent=1 // pred_check
      _
    $region55: #{tpu_custom_call.1} parent=1 // pred_check_branch
      %91 = sbr.rel (0) target = $region57
    $region56: #{tpu_custom_call.1} parent=1 // pred_region
      %92 = dma.done [#allocation11], 256
    $region57: #{tpu_custom_call.1} parent=1 // pred_fallthru
      _
    %vm94 = vcmask 257024
    %95 = vst.msk [vmem:[#allocation12] sm:$0xf] %vm94, 0
    %96 = vst.msk [vmem:[#allocation12 + $0x4] sm:$0xf] %vm94, 0
    %97 = vst.msk [vmem:[#allocation12 + $0x8] sm:$0xf] %vm94, 0
    %98 = vst.msk [vmem:[#allocation12 + $0xc] sm:$0xf] %vm94, 0
    %99 = vst.msk [vmem:[#allocation12 + $0x10] sm:$0xf] %vm94, 0
    %100 = vst.msk [vmem:[#allocation12 + $0x14] sm:$0xf] %vm94, 0
    %101 = vst.msk [vmem:[#allocation12 + $0x18] sm:$0xf] %vm94, 0
    %102 = vst.msk [vmem:[#allocation12 + $0x1c] sm:$0xf] %vm94, 0
    %s103 = sld [smem:[#allocation3]]
    %v104 = vld [vmem:[%s2] sm:$0xff]
    %v105 = vld [vmem:[%s3] sm:$0xf]
    %v106 = vld [vmem:[%s3 + $0x4] sm:$0xf]
    %v107 = vld [vmem:[%s3 + $0x8] sm:$0xf]
    %v108 = vld [vmem:[%s3 + $0xc] sm:$0xf]
    %v109 = vld [vmem:[#allocation7] sm:$0xf]
    %v110 = vld [vmem:[#allocation7 + $0x4] sm:$0xf]
    %v111 = vld [vmem:[#allocation7 + $0x8] sm:$0xf]
    %v112 = vld [vmem:[#allocation7 + $0xc] sm:$0xf]
    %v113 = vld [vmem:[#allocation9] sm:$0xff]
    %v114 = vld [vmem:[#allocation9 + $0x8] sm:$0xff]
    %v115 = vld [vmem:[#allocation10] sm:$0xff]
    %v116 = vld [vmem:[#allocation10 + $0x8] sm:$0xff]
    %v117 = vld [vmem:[%s7] sm:$0x1]
    %v118 = vld [vmem:[%s8] sm:$0x1]
    %v119 = vld [vmem:[%s9] sm:$0x1]
    %v120 = vld [vmem:[%s10] sm:$0x1]
    // While loop
    $region58: #{tpu_custom_call.1} parent=1 // loop_pre_header
      _
    $region59: #{tpu_custom_call.1} parent=1 // loop_header
      %s122 = sphi 0, %s124
      %p123 = scmp.ge.s32.totalorder %s122, %s103
      %v127 = vphi 0.0, %v486
      %v128 = vphi 0.0, %v492
    $region60: #{tpu_custom_call.1} parent=1 // loop_header_branch
      %126 = sbr.rel (%p123) target = $region64
    $region61: #{tpu_custom_call.1} parent=1 // loop_body
      %s129 = ssub.s32 %s103, 1
      %s130 = ssub.s32 %s129, %s122
      %s131 = smul.addr %s122, 4
      %s132 = scalar_lea.vmem [#allocation4], %s131
      %v133 = vld [vmem:[%s132] sm:$0xf]
      %s134 = smul.addr %s130, 4
      %s135 = scalar_lea.vmem [#allocation4], %s134
      %v136 = vld [vmem:[%s135] sm:$0xf]
      %v138 = vlaneseq
      %v139 = vshrl.u32 %v138, 7
      %v140 = vsub.s32 0, %v139
      %v141 = vrot.slane %v117, %v140
      %v147 = vunpack.c.l.b16 %v105
      %v148 = vunpack.c.l.b16 %v106
      %v149 = vunpack.c.l.b16 %v107
      %v150 = vunpack.c.l.b16 %v108
      %v151 = vpack.c.b16 %v148, %v147
      %v152 = vpack.c.b16 %v150, %v149
      %vm155 = vcmask 261120
      %v157 = vsel %vm155, %v133, 0
      %159 = vmatprep.subr.bf16.mxu0 0
      %160 = vmatpush1.bf16.msra.mxu0 %v151
      %161 = vmatprep.subr.bf16.mxu0 0
      %162 = vmatpush1.bf16.msra.mxu0 %v152
      %163 = vmatprep.subr.bf16.mxu0 0
      %164 = vmatpush1.bf16.msra.mxu0 0
      %165 = vmatprep.subr.bf16.mxu0 0
      %166 = vmatpush1.bf16.msra.mxu0 0
      %167 = vmatprep.subr.bf16.mxu0 0
      %168 = vmatpush1.bf16.msra.mxu0 0
      %169 = vmatprep.subr.bf16.mxu0 0
      %170 = vmatpush1.bf16.msra.mxu0 0
      %171 = vmatprep.subr.bf16.mxu0 0
      %172 = vmatpush1.bf16.msra.mxu0 0
      %173 = vmatprep.subr.bf16.mxu0 0
      %174 = vmatpush1.bf16.msra.mxu0 0
      %175 = vmatprep.subr.bf16.mxu0 0
      %176 = vmatpush1.bf16.msra.mxu0 0
      %177 = vmatprep.subr.bf16.mxu0 0
      %178 = vmatpush1.bf16.msra.mxu0 0
      %179 = vmatprep.subr.bf16.mxu0 0
      %180 = vmatpush1.bf16.msra.mxu0 0
      %181 = vmatprep.subr.bf16.mxu0 0
      %182 = vmatpush1.bf16.msra.mxu0 0
      %183 = vmatprep.subr.bf16.mxu0 0
      %184 = vmatpush1.bf16.msra.mxu0 0
      %185 = vmatprep.subr.bf16.mxu0 0
      %186 = vmatpush1.bf16.msra.mxu0 0
      %187 = vmatprep.subr.bf16.mxu0 0
      %188 = vmatpush1.bf16.msra.mxu0 0
      %189 = vmatprep.subr.bf16.mxu0 0
      %190 = vmatpush1.bf16.msra.mxu0 0
      %191 = vmatprep.mubr.bf16.mxu0 0
      %192 = vmatmul.mubr.bf16.gmra.mrb[0].mxu0 %v157
      %v193 = vpop.f32.mrb[0].mxu0
      %v194 = vadd.f32 %v141, %v193
      %v195 = vpop.f32.mrb[0].mxu0
      %v196 = vpop.f32.mrb[0].mxu0
      %v197 = vpop.f32.mrb[0].mxu0
      %198 = vdwg.mxu0
      %v200 = vlaneseq
      %v201 = vshrl.u32 %v200, 7
      %v202 = vsub.s32 0, %v201
      %v203 = vrot.slane %v118, %v202
      %v209 = vunpack.c.l.b16 %v109
      %v210 = vunpack.c.l.b16 %v110
      %v211 = vunpack.c.l.b16 %v111
      %v212 = vunpack.c.l.b16 %v112
      %v213 = vpack.c.b16 %v210, %v209
      %v214 = vpack.c.b16 %v212, %v211
      %v218 = vsel %vm155, %v136, 0
      %220 = vmatprep.subr.bf16.mxu0 0
      %221 = vmatpush1.bf16.msra.mxu0 %v213
      %222 = vmatprep.subr.bf16.mxu0 0
      %223 = vmatpush1.bf16.msra.mxu0 %v214
      %224 = vmatprep.subr.bf16.mxu0 0
      %225 = vmatpush1.bf16.msra.mxu0 0
      %226 = vmatprep.subr.bf16.mxu0 0
      %227 = vmatpush1.bf16.msra.mxu0 0
      %228 = vmatprep.subr.bf16.mxu0 0
      %229 = vmatpush1.bf16.msra.mxu0 0
      %230 = vmatprep.subr.bf16.mxu0 0
      %231 = vmatpush1.bf16.msra.mxu0 0
      %232 = vmatprep.subr.bf16.mxu0 0
      %233 = vmatpush1.bf16.msra.mxu0 0
      %234 = vmatprep.subr.bf16.mxu0 0
      %235 = vmatpush1.bf16.msra.mxu0 0
      %236 = vmatprep.subr.bf16.mxu0 0
      %237 = vmatpush1.bf16.msra.mxu0 0
      %238 = vmatprep.subr.bf16.mxu0 0
      %239 = vmatpush1.bf16.msra.mxu0 0
      %240 = vmatprep.subr.bf16.mxu0 0
      %241 = vmatpush1.bf16.msra.mxu0 0
      %242 = vmatprep.subr.bf16.mxu0 0
      %243 = vmatpush1.bf16.msra.mxu0 0
      %244 = vmatprep.subr.bf16.mxu0 0
      %245 = vmatpush1.bf16.msra.mxu0 0
      %246 = vmatprep.subr.bf16.mxu0 0
      %247 = vmatpush1.bf16.msra.mxu0 0
      %248 = vmatprep.subr.bf16.mxu0 0
      %249 = vmatpush1.bf16.msra.mxu0 0
      %250 = vmatprep.subr.bf16.mxu0 0
      %251 = vmatpush1.bf16.msra.mxu0 0
      %252 = vmatprep.mubr.bf16.mxu0 0
      %253 = vmatmul.mubr.bf16.gmra.mrb[0].mxu0 %v218
      %v254 = vpop.f32.mrb[0].mxu0
      %v255 = vadd.f32 %v203, %v254
      %v256 = vpop.f32.mrb[0].mxu0
      %v257 = vpop.f32.mrb[0].mxu0
      %v258 = vpop.f32.mrb[0].mxu0
      %259 = vdwg.mxu0
      %v261 = vlaneseq
      %v262 = vshrl.u32 %v261, 7
      %v263 = vsub.s32 0, %v262
      %v264 = vrot.slane %v119, %v263
      %267 = vrot.lane.b32.xlu0 %v127, 96
      %v268 = vpop.permute.xlu0 %267
      %vm269 = vcmask 130048
      %v270 = vsel %vm269, %v268, 0
      %272 = vmatprep.subr.mxu0 0.0
      %273 = vmatpush1.msra.mxu0 %v113
      %274 = vmatprep.subr.mxu0 0.0
      %275 = vmatpush1.msra.mxu0 %v114
      %276 = vmatprep.subr.mxu0 0.0
      %277 = vmatpush1.msra.mxu0 0.0
      %278 = vmatprep.subr.mxu0 0.0
      %279 = vmatpush1.msra.mxu0 0.0
      %280 = vmatprep.subr.mxu0 0.0
      %281 = vmatpush1.msra.mxu0 0.0
      %282 = vmatprep.subr.mxu0 0.0
      %283 = vmatpush1.msra.mxu0 0.0
      %284 = vmatprep.subr.mxu0 0.0
      %285 = vmatpush1.msra.mxu0 0.0
      %286 = vmatprep.subr.mxu0 0.0
      %287 = vmatpush1.msra.mxu0 0.0
      %288 = vmatprep.subr.mxu0 0.0
      %289 = vmatpush1.msra.mxu0 0.0
      %290 = vmatprep.subr.mxu0 0.0
      %291 = vmatpush1.msra.mxu0 0.0
      %292 = vmatprep.subr.mxu0 0.0
      %293 = vmatpush1.msra.mxu0 0.0
      %294 = vmatprep.subr.mxu0 0.0
      %295 = vmatpush1.msra.mxu0 0.0
      %296 = vmatprep.subr.mxu0 0.0
      %297 = vmatpush1.msra.mxu0 0.0
      %298 = vmatprep.subr.mxu0 0.0
      %299 = vmatpush1.msra.mxu0 0.0
      %300 = vmatprep.subr.mxu0 0.0
      %301 = vmatpush1.msra.mxu0 0.0
      %302 = vmatprep.subr.mxu0 0.0
      %303 = vmatpush1.msra.mxu0 0.0
      %304 = vmatprep.subr.mxu0 0.0
      %305 = vmatpush1.msra.mxu0 0.0
      %306 = vmatprep.subr.mxu0 0.0
      %307 = vmatpush1.msra.mxu0 0.0
      %308 = vmatprep.subr.mxu0 0.0
      %309 = vmatpush1.msra.mxu0 0.0
      %310 = vmatprep.subr.mxu0 0.0
      %311 = vmatpush1.msra.mxu0 0.0
      %312 = vmatprep.subr.mxu0 0.0
      %313 = vmatpush1.msra.mxu0 0.0
      %314 = vmatprep.subr.mxu0 0.0
      %315 = vmatpush1.msra.mxu0 0.0
      %316 = vmatprep.subr.mxu0 0.0
      %317 = vmatpush1.msra.mxu0 0.0
      %318 = vmatprep.subr.mxu0 0.0
      %319 = vmatpush1.msra.mxu0 0.0
      %320 = vmatprep.subr.mxu0 0.0
      %321 = vmatpush1.msra.mxu0 0.0
      %322 = vmatprep.subr.mxu0 0.0
      %323 = vmatpush1.msra.mxu0 0.0
      %324 = vmatprep.subr.mxu0 0.0
      %325 = vmatpush1.msra.mxu0 0.0
      %326 = vmatprep.subr.mxu0 0.0
      %327 = vmatpush1.msra.mxu0 0.0
      %328 = vmatprep.subr.mxu0 0.0
      %329 = vmatpush1.msra.mxu0 0.0
      %330 = vmatprep.subr.mxu0 0.0
      %331 = vmatpush1.msra.mxu0 0.0
      %332 = vmatprep.subr.mxu0 0.0
      %333 = vmatpush1.msra.mxu0 0.0
      %334 = vmatprep.subr.mxu0 0.0
      %335 = vmatpush1.msra.mxu0 0.0
      %336 = vmatprep.mubr.f32.mxu0 0.0
      %337 = vmatmul.mubr.f32.gmra.mrb[0].mxu0 %v270
      %v338 = vpop.f32.mrb[0].mxu0
      %v339 = vadd.f32 %v264, %v338
      %v340 = vpop.f32.mrb[0].mxu0
      %341 = vdwg.mxu0
      %v342 = vadd.f32 %v194, %v339
      %v343 = vmul.f32 %v342, 0.5
      %v344 = vtanh.pop %v343
      %v345 = vadd.f32 %v344, 1.0
      %v346 = vmul.f32 %v345, 0.5
      %348 = vrot.lane.b32.xlu0 %v339, 96
      %v349 = vpop.permute.xlu0 %348
      %v351 = vmul.f32 %v346, %v349
      %353 = vrot.lane.b32.xlu0 %v351, 32
      %v354 = vpop.permute.xlu0 %353
      %v356 = vadd.f32 %v194, %v354
      %v357 = vtanh.pop %v356
      %v358 = vsub.f32 %v127, %v357
      %360 = vrot.lane.b32.xlu0 %v358, 112
      %v361 = vpop.permute.xlu0 %360
      %v363 = vmul.f32 %v346, %v361
      %365 = vrot.lane.b32.xlu0 %v363, 16
      %v366 = vpop.permute.xlu0 %365
      %v368 = vadd.f32 %v357, %v366
      %v370 = vlaneseq
      %v371 = vshrl.u32 %v370, 7
      %v372 = vsub.s32 0, %v371
      %v373 = vrot.slane %v120, %v372
      %376 = vrot.lane.b32.xlu0 %v128, 96
      %v377 = vpop.permute.xlu0 %376
      %v378 = vsel %vm269, %v377, 0
      %380 = vmatprep.subr.mxu0 0.0
      %381 = vmatpush1.msra.mxu0 %v115
      %382 = vmatprep.subr.mxu0 0.0
      %383 = vmatpush1.msra.mxu0 %v116
      %384 = vmatprep.subr.mxu0 0.0
      %385 = vmatpush1.msra.mxu0 0.0
      %386 = vmatprep.subr.mxu0 0.0
      %387 = vmatpush1.msra.mxu0 0.0
      %388 = vmatprep.subr.mxu0 0.0
      %389 = vmatpush1.msra.mxu0 0.0
      %390 = vmatprep.subr.mxu0 0.0
      %391 = vmatpush1.msra.mxu0 0.0
      %392 = vmatprep.subr.mxu0 0.0
      %393 = vmatpush1.msra.mxu0 0.0
      %394 = vmatprep.subr.mxu0 0.0
      %395 = vmatpush1.msra.mxu0 0.0
      %396 = vmatprep.subr.mxu0 0.0
      %397 = vmatpush1.msra.mxu0 0.0
      %398 = vmatprep.subr.mxu0 0.0
      %399 = vmatpush1.msra.mxu0 0.0
      %400 = vmatprep.subr.mxu0 0.0
      %401 = vmatpush1.msra.mxu0 0.0
      %402 = vmatprep.subr.mxu0 0.0
      %403 = vmatpush1.msra.mxu0 0.0
      %404 = vmatprep.subr.mxu0 0.0
      %405 = vmatpush1.msra.mxu0 0.0
      %406 = vmatprep.subr.mxu0 0.0
      %407 = vmatpush1.msra.mxu0 0.0
      %408 = vmatprep.subr.mxu0 0.0
      %409 = vmatpush1.msra.mxu0 0.0
      %410 = vmatprep.subr.mxu0 0.0
      %411 = vmatpush1.msra.mxu0 0.0
      %412 = vmatprep.subr.mxu0 0.0
      %413 = vmatpush1.msra.mxu0 0.0
      %414 = vmatprep.subr.mxu0 0.0
      %415 = vmatpush1.msra.mxu0 0.0
      %416 = vmatprep.subr.mxu0 0.0
      %417 = vmatpush1.msra.mxu0 0.0
      %418 = vmatprep.subr.mxu0 0.0
      %419 = vmatpush1.msra.mxu0 0.0
      %420 = vmatprep.subr.mxu0 0.0
      %421 = vmatpush1.msra.mxu0 0.0
      %422 = vmatprep.subr.mxu0 0.0
      %423 = vmatpush1.msra.mxu0 0.0
      %424 = vmatprep.subr.mxu0 0.0
      %425 = vmatpush1.msra.mxu0 0.0
      %426 = vmatprep.subr.mxu0 0.0
      %427 = vmatpush1.msra.mxu0 0.0
      %428 = vmatprep.subr.mxu0 0.0
      %429 = vmatpush1.msra.mxu0 0.0
      %430 = vmatprep.subr.mxu0 0.0
      %431 = vmatpush1.msra.mxu0 0.0
      %432 = vmatprep.subr.mxu0 0.0
      %433 = vmatpush1.msra.mxu0 0.0
      %434 = vmatprep.subr.mxu0 0.0
      %435 = vmatpush1.msra.mxu0 0.0
      %436 = vmatprep.subr.mxu0 0.0
      %437 = vmatpush1.msra.mxu0 0.0
      %438 = vmatprep.subr.mxu0 0.0
      %439 = vmatpush1.msra.mxu0 0.0
      %440 = vmatprep.subr.mxu0 0.0
      %441 = vmatpush1.msra.mxu0 0.0
      %442 = vmatprep.subr.mxu0 0.0
      %443 = vmatpush1.msra.mxu0 0.0
      %444 = vmatprep.mubr.f32.mxu0 0.0
      %445 = vmatmul.mubr.f32.gmra.mrb[0].mxu0 %v378
      %v446 = vpop.f32.mrb[0].mxu0
      %v447 = vadd.f32 %v373, %v446
      %v448 = vpop.f32.mrb[0].mxu0
      %449 = vdwg.mxu0
      %v450 = vadd.f32 %v255, %v447
      %v451 = vmul.f32 %v450, 0.5
      %v452 = vtanh.pop %v451
      %v453 = vadd.f32 %v452, 1.0
      %v454 = vmul.f32 %v453, 0.5
      %456 = vrot.lane.b32.xlu0 %v447, 96
      %v457 = vpop.permute.xlu0 %456
      %v459 = vmul.f32 %v454, %v457
      %461 = vrot.lane.b32.xlu0 %v459, 32
      %v462 = vpop.permute.xlu0 %461
      %v464 = vadd.f32 %v255, %v462
      %v465 = vtanh.pop %v464
      %v466 = vsub.f32 %v128, %v465
      %468 = vrot.lane.b32.xlu0 %v466, 112
      %v469 = vpop.permute.xlu0 %468
      %v471 = vmul.f32 %v454, %v469
      %473 = vrot.lane.b32.xlu0 %v471, 16
      %v474 = vpop.permute.xlu0 %473
      %v476 = vadd.f32 %v465, %v474
      %v477 = vstv %s122
      %vm478 = vcmp.gt.s32.totalorder %v104, %v477
      %v479 = vstv %s130
      %vm480 = vcmp.gt.s32.totalorder %v104, %v479
      %v481 = vsel %vm478, 1, 0
      %482 = vset.pattern.permute.xlu0 0
      %483 = vperm.xlu0 %482, %v481
      %v484 = vpop.permute.xlu0 %483
      %vm485 = vcmp.eq.s32.totalorder %v484, 1
      %v486 = vsel %vm485, %v368, %v127
      %v487 = vsel %vm480, 1, 0
      %488 = vset.pattern.permute.xlu0 0
      %489 = vperm.xlu0 %488, %v487
      %v490 = vpop.permute.xlu0 %489
      %vm491 = vcmp.eq.s32.totalorder %v490, 1
      %v492 = vsel %vm491, %v476, %v128
      %v493 = vsel %vm485, %v368, 0.0
      %v494 = vpack.c.bf16 %v493, %v493
      %v496 = vunpack.c.l.b16 %v494
      %v497 = vpack.c.b16 %v496, %v496
      %498 = vrot.lane.b32.xlu0 %v497, 96
      %v499 = vpop.permute.xlu0 %498
      %s501 = smul.addr %s122, 4
      %s502 = scalar_lea.vmem [#allocation12], %s501
      %vm503 = vcmask 125952
      %504 = vst.msk [vmem:[%s502] sm:$0xf] %vm503, %v499
      %v505 = vsel %vm491, %v476, 0.0
      %v506 = vpack.c.bf16 %v505, %v505
      %v508 = vunpack.c.l.b16 %v506
      %v509 = vpack.c.b16 %v508, %v508
      %510 = vrot.lane.b32.xlu0 %v509, 112
      %v511 = vpop.permute.xlu0 %510
      %s513 = smul.addr %s130, 4
      %s514 = scalar_lea.vmem [#allocation12], %s513
      %vm515 = vcmask 257152
      %516 = vst.msk [vmem:[%s514] sm:$0xf] %vm515, %v511
    $region62: #{tpu_custom_call.1} parent=1 // loop_footer
      %s124 = sadd.s32 %s122, 1
    $region63: #{tpu_custom_call.1} parent=1 // loop_footer_branch
      %121 = sbr.rel target = $region59
    $region64: #{tpu_custom_call.1} parent=1 // loop_exit
      _
    // Predicated region
    $region65: #{tpu_custom_call.1} parent=1 // pred_check
      _
    $region66: #{tpu_custom_call.1} parent=1 // pred_check_branch
      %518 = sbr.rel (0) target = $region68
    $region67: #{tpu_custom_call.1} parent=1 // pred_region
      %s520 = ssub.s32 512, 512
      %521 = vsyncadd [#allocation6], %s520
      %s522 = sshll.u32 [#allocation12], 4
      %s523 = int_to_ptr.vmem [resolvable:$true] %s522
      %528 = dma.vmem_to_hbm [thread:$0]  %s523, 512, %s11, [#allocation6], 64, 64, 4
    $region68: #{tpu_custom_call.1} parent=1 // pred_fallthru
      _
    // Predicated region
    $region69: #{tpu_custom_call.1} parent=1 // pred_check
      _
    $region70: #{tpu_custom_call.1} parent=1 // pred_check_branch
      %530 = sbr.rel (0) target = $region72
    $region71: #{tpu_custom_call.1} parent=1 // pred_region
      %531 = dma.done [#allocation6], 512
    $region72: #{tpu_custom_call.1} parent=1 // pred_fallthru
      _
    %532 = vsyncpa [#allocation5], 1
    %533 = vsyncpa [#allocation8], 1
    %534 = vsyncpa [#allocation11], 1
    %535 = vsyncpa [#allocation6], 1

</llo_original>
